<compile_context>
chip_gen: v7x
topology: tpu7x:2x2x1
jax: 0.10.0
libtpu: 0.0.40
codegen_flags: <defaults>
</compile_context>

<pallas_src>
import math

import jax
import jax.numpy as jnp
from jax.experimental import pallas as pl
from jax.experimental.pallas import tpu as pltpu


def _reverse_bn_kernel(params_ref, y_ref, x_ref):
    # params_ref: (2, Cp, 1) f32 -> [scale, shift], VMEM-resident across the grid.
    # y_ref / x_ref: (nb, Cp, tile) activation slab.
    scale = params_ref[0]          # (Cp, 1) f32, broadcasts over (nb, Cp, tile)
    shift = params_ref[1]          # (Cp, 1) f32
    y = y_ref[...].astype(jnp.float32)
    x_ref[...] = (y * scale + shift).astype(x_ref.dtype)


def _round_up(x, m):
    return (x + m - 1) // m * m


def _plan_blocks(N, C, HW, itemsize, budget_bytes):
    """Pick (channel-pack factor k, batch fold nb, lane tile).

    budget_bytes covers 2 input + 2 output double buffers plus the (padded)
    params block, using PADDED shapes ((8,128)-granular VMEM tiling).
    """
    # --- sublane packing for small C (free reshape (C, HW) -> (C*k, HW/k)) ---
    sublane = 32 // itemsize                      # 8 f32 / 16 bf16 / 32 int8
    k = sublane // math.gcd(C, sublane)
    if k > 1 and HW % k != 0:
        k = 1                                     # cannot pack; keep layout as-is
    Cp = C * k
    HWp = HW // k

    # --- padded VMEM footprint accounting ---
    C_pad = _round_up(Cp, sublane)                # sublane padding of channel dim
    # params (2, Cp, 1) pads to (2, round_up(Cp,8), 128) f32; count 2 buffers.
    params_bytes = 2 * 2 * _round_up(Cp, 8) * 128 * 4
    avail = max(budget_bytes - params_bytes, 1 << 20)
    per_lane = 4 * C_pad * itemsize               # 2 in bufs + 2 out bufs, per lane

    # --- lane tile: as big as the budget allows (no artificial cap) ---
    max_tile = max(128, (avail // per_lane) // 128 * 128)
    if HWp <= max_tile:
        tile = HWp                                # single full-extent lane block
    else:
        # Prefer the largest 128-multiple tile that divides HWp -> no masked tail.
        tile = max_tile
        t = max_tile
        while t >= 128:
            if HWp % t == 0:
                tile = t
                break
            t -= 128

    # --- fold batch when one sample fits in a single block ---
    nb = 1
    if tile == HWp and N > 1:
        per_sample = 4 * C_pad * _round_up(HWp, 128) * itemsize
        nb = int(max(1, min(N, avail // max(per_sample, 1))))
    return k, nb, tile


def reverse_batchnorm2d(y, weight, bias, running_mean, running_var, eps=1e-5):
    """y: (N, C, H, W) float array. Returns x with same shape/dtype."""
    N, C, H, W = y.shape
    HW = H * W
    itemsize = jnp.dtype(y.dtype).itemsize

    # Per-channel factors in f32 regardless of activation dtype (precision).
    wf = weight.astype(jnp.float32)
    bf = bias.astype(jnp.float32)
    mf = running_mean.astype(jnp.float32)
    vf = running_var.astype(jnp.float32)
    scale = jnp.sqrt(vf + eps) / wf               # (C,)  weight==0 -> inf (matches torch)
    shift = mf - bf * scale                       # (C,)

    # Buffer budget safe on every generation (v7x has only 64 MiB VMEM per TC);
    # vmem_limit_bytes raised explicitly so v5e's 16 MiB scoped default is not
    # the binding constraint either.
    BUDGET_BYTES = 24 << 20
    VMEM_LIMIT_BYTES = 48 << 20

    k, nb, tile = _plan_blocks(N, C, HW, itemsize, BUDGET_BYTES)
    Cp, HWp = C * k, HW // k

    # Free reshapes on the row-major NCHW layout.
    y3 = y.reshape(N, Cp, HWp)
    scale_p = jnp.repeat(scale, k)                # row c*k+j holds channel c
    shift_p = jnp.repeat(shift, k)
    params = jnp.stack([scale_p, shift_p]).reshape(2, Cp, 1)

    grid = (pl.cdiv(N, nb), pl.cdiv(HWp, tile))

    x3 = pl.pallas_call(
        _reverse_bn_kernel,
        out_shape=jax.ShapeDtypeStruct((N, Cp, HWp), y.dtype),
        grid_spec=pltpu.PrefetchScalarGridSpec(
            num_scalar_prefetch=0,
            grid=grid,
            in_specs=[
                # scale/shift: constant index_map -> stays resident in VMEM.
                pl.BlockSpec((2, Cp, 1), lambda n, j: (0, 0, 0)),
                # activations: nb samples x full channel dim x lane tile.
                pl.BlockSpec((nb, Cp, tile), lambda n, j: (n, 0, j)),
            ],
            out_specs=pl.BlockSpec((nb, Cp, tile), lambda n, j: (n, 0, j)),
        ),
        compiler_params=pltpu.CompilerParams(
            dimension_semantics=("parallel", "parallel"),
            vmem_limit_bytes=VMEM_LIMIT_BYTES,
        ),
        cost_estimate=pl.CostEstimate(
            flops=2 * N * C * HW,
            transcendentals=0,
            bytes_accessed=2 * N * C * HW * itemsize + 2 * C * 4,
        ),
    )(params, y3)

    return x3.reshape(N, C, H, W)


def _reference(y, weight, bias, running_mean, running_var, eps=1e-5):
    b = bias.reshape(1, -1, 1, 1)
    w = weight.reshape(1, -1, 1, 1)
    v = running_var.reshape(1, -1, 1, 1)
    m = running_mean.reshape(1, -1, 1, 1)
    x = (y - b) / w
    x = x * jnp.sqrt(v + eps)
    x = x + m
    return x


if __name__ == "__main__":
    key = jax.random.PRNGKey(0)
    k_y, k_w, k_b, k_m, k_v = jax.random.split(key, 5)

    N, C, H, W = 2, 4, 16, 16
    eps = 1e-5

    y = jax.random.normal(k_y, (N, C, H, W), dtype=jnp.float32)
    # Deterministic synthetic BatchNorm buffers (shapes from nn.BatchNorm2d(C)).
    weight = jax.random.normal(k_w, (C,), dtype=jnp.float32) * 0.5 + 1.0   # nonzero scale
    bias = jax.random.normal(k_b, (C,), dtype=jnp.float32) * 0.1
    running_mean = jax.random.normal(k_m, (C,), dtype=jnp.float32) * 0.2
    running_var = jnp.abs(jax.random.normal(k_v, (C,), dtype=jnp.float32)) + 0.5

    x = reverse_batchnorm2d(y, weight, bias, running_mean, running_var, eps=eps)
    x = jax.block_until_ready(x)

    x_ref = _reference(y, weight, bias, running_mean, running_var, eps=eps)
    assert x.shape == (N, C, H, W)
    assert x.dtype == y.dtype
    assert jnp.allclose(x, x_ref, atol=1e-5, rtol=1e-5), "mismatch vs reference"

    print("KERNEL_OK")
</pallas_src>

<mosaic_0001>
module attributes {stable_mosaic.version = 11 : i64} {
  func.func @_reverse_bn_kernel(%arg0: i32, %arg1: i32, %arg2: memref<2x8x1xf32, #tpu.memory_space<vmem>>, %arg3: memref<2x8x128xf32, #tpu.memory_space<vmem>>, %arg4: memref<2x8x128xf32, #tpu.memory_space<vmem>>) attributes {dimension_semantics = [#tpu.dimension_semantics<parallel>, #tpu.dimension_semantics<parallel>], iteration_bounds = array<i64: 1, 1>, scalar_prefetch = 0 : i64, scratch_operands = 0 : i64, tpu.core_type = #tpu.core_type<tc>, window_params = [{pipeline_mode = #tpu.pipeline_mode<synchronous>, transform_indices = @transform_0, window_bounds = array<i64: 2, 8, 1>}, {transform_indices = @transform_1, window_bounds = array<i64: 2, 8, 128>}, {transform_indices = @transform_2, window_bounds = array<i64: 2, 8, 128>}]} {
    %c0 = arith.constant 0 : index
    %c0_0 = arith.constant 0 : index
    %c0_1 = arith.constant 0 : index
    %0 = vector.load %arg2[%c0, %c0_0, %c0_1] : memref<2x8x1xf32, #tpu.memory_space<vmem>>, vector<1x8x1xf32>
    %1 = vector.shape_cast %0 : vector<1x8x1xf32> to vector<8x1xf32>
    %c1 = arith.constant 1 : index
    %c0_2 = arith.constant 0 : index
    %c0_3 = arith.constant 0 : index
    %2 = vector.load %arg2[%c1, %c0_2, %c0_3] : memref<2x8x1xf32, #tpu.memory_space<vmem>>, vector<1x8x1xf32>
    %3 = vector.shape_cast %2 : vector<1x8x1xf32> to vector<8x1xf32>
    %c0_4 = arith.constant 0 : index
    %c0_5 = arith.constant 0 : index
    %c0_6 = arith.constant 0 : index
    %4 = vector.load %arg3[%c0_4, %c0_5, %c0_6] : memref<2x8x128xf32, #tpu.memory_space<vmem>>, vector<2x8x128xf32>
    %5 = vector.shape_cast %1 : vector<8x1xf32> to vector<1x8x1xf32>
    %6 = vector.broadcast %5 : vector<1x8x1xf32> to vector<2x8x128xf32>
    %7 = arith.mulf %4, %6 : vector<2x8x128xf32>
    %8 = vector.shape_cast %3 : vector<8x1xf32> to vector<1x8x1xf32>
    %9 = vector.broadcast %8 : vector<1x8x1xf32> to vector<2x8x128xf32>
    %10 = arith.addf %7, %9 : vector<2x8x128xf32>
    %c0_7 = arith.constant 0 : index
    %c0_8 = arith.constant 0 : index
    %c0_9 = arith.constant 0 : index
    %11 = vector.load %arg4[%c0_7, %c0_8, %c0_9] : memref<2x8x128xf32, #tpu.memory_space<vmem>>, vector<2x8x128xf32>
    tpu.vector_store %arg4[%c0_7, %c0_8, %c0_9], %10 {strides = array<i32>} : memref<2x8x128xf32, #tpu.memory_space<vmem>>, vector<2x8x128xf32>,
    return
  }
  func.func @transform_0(%arg0: i32, %arg1: i32) -> (i32, i32, i32) {
    %c0_i32 = arith.constant 0 : i32
    %c0_i32_0 = arith.constant 0 : i32
    %c0_i32_1 = arith.constant 0 : i32
    %c0_i32_2 = arith.constant 0 : i32
    return %c0_i32, %c0_i32_0, %c0_i32_1 : i32, i32, i32
  }
  func.func @transform_1(%arg0: i32, %arg1: i32) -> (i32, i32, i32) {
    %c0_i32 = arith.constant 0 : i32
    %c0_i32_0 = arith.constant 0 : i32
    return %arg0, %c0_i32, %arg1 : i32, i32, i32
  }
  func.func @transform_2(%arg0: i32, %arg1: i32) -> (i32, i32, i32) {
    %c0_i32 = arith.constant 0 : i32
    %c0_i32_0 = arith.constant 0 : i32
    return %arg0, %c0_i32, %arg1 : i32, i32, i32
  }
}

</mosaic_0001>

<llo_original>
// kernel: tpu_custom_call.1
$region0: #{tpu_custom_call.1}
  #allocation0 [shape = 'u32[]', space=smem, size = 0x4, offset = 0x4, fixed_abs, tag = 'smem constant byte address 0x4 - core index']
  #allocation1 [shape = 'u32[144,128]{1,0:T(1,128)}', space=vmem, size = 0x12000, scoped, tag = 'internal scratch']
  %s0 = inlined_call_operand.vmem [shape: f32[2,8,1], index: 0, kind: input, shape index: {}]
  %s1 = inlined_call_operand.vmem [shape: f32[2,8,128], index: 1, kind: input, shape index: {}]
  %s2 = inlined_call_operand.hbm [shape: f32[2,8,128], index: 2, kind: output, shape index: {}]
  %s3 = sld [smem:[#allocation0]]
  $region18: #{tpu_custom_call.1} parent=0
    _
  %s5 = ssub.s32 1, %s3
  %s6 = scalar_select 0, %s5, %s3
  $region1: #{tpu_custom_call.1} parent=0
    #allocation2 [shape = 'u8[8192]{0}', space=vmem, size = 0x2000, scoped, tag = 'output window, operand 0, single buffered']
    #allocation3 [shape = 's32[1]{0}', space=sflag, size = 0x4, scoped, tag = 'scoped memory for tpu_custom_call.1']
    %7 = vsyncpa [#allocation3], 0
    // Predicated region
    $region2: #{tpu_custom_call.1} parent=1 // pred_check
      _
    $region3: #{tpu_custom_call.1} parent=1 // pred_check_branch
      %9 = sbr.rel (0) target = $region5
    $region4: #{tpu_custom_call.1} parent=1 // pred_region
      _
    $region5: #{tpu_custom_call.1} parent=1 // pred_fallthru
      _
    // Predicated region
    $region6: #{tpu_custom_call.1} parent=1 // pred_check
      _
    $region7: #{tpu_custom_call.1} parent=1 // pred_check_branch
      %11 = sbr.rel (0) target = $region9
    $region8: #{tpu_custom_call.1} parent=1 // pred_region
      _
    $region9: #{tpu_custom_call.1} parent=1 // pred_fallthru
      _
    %v12 = vld [vmem:[%s0] sm:$0xff]
    %s13 = scalar_lea.vmem %s0, 8
    %v14 = vld [vmem:[%s13] sm:$0xff]
    %v15 = vld [vmem:[%s1] sm:$0xff]
    %v16 = vld [vmem:[%s1 + $0x8] sm:$0xff]
    %18 = vset.pattern.permute.xlu0 0
    %19 = vperm.xlu0 %18, %v12
    %v20 = vpop.permute.xlu0 %19
    %v22 = vmul.f32 %v15, %v20
    %v23 = vmul.f32 %v16, %v20
    %25 = vset.pattern.permute.xlu0 0
    %26 = vperm.xlu0 %25, %v14
    %v27 = vpop.permute.xlu0 %26
    %v29 = vadd.f32 %v22, %v27
    %v30 = vadd.f32 %v23, %v27
    %31 = vst [vmem:[#allocation2] sm:$0xff] %v29
    %32 = vst [vmem:[#allocation2 + $0x8] sm:$0xff] %v30
    // Predicated region
    $region10: #{tpu_custom_call.1} parent=1 // pred_check
      _
    $region11: #{tpu_custom_call.1} parent=1 // pred_check_branch
      %34 = sbr.rel (0) target = $region13
    $region12: #{tpu_custom_call.1} parent=1 // pred_region
      %s36 = ssub.s32 256, 256
      %37 = vsyncadd [#allocation3], %s36
      %s38 = sshll.u32 [#allocation2], 4
      %s39 = int_to_ptr.vmem [resolvable:$true] %s38
      %44 = dma.vmem_to_hbm [thread:$0]  %s39, 256, %s2, [#allocation3], 128, 128, 8
    $region13: #{tpu_custom_call.1} parent=1 // pred_fallthru
      _
    // Predicated region
    $region14: #{tpu_custom_call.1} parent=1 // pred_check
      _
    $region15: #{tpu_custom_call.1} parent=1 // pred_check_branch
      %46 = sbr.rel (0) target = $region17
    $region16: #{tpu_custom_call.1} parent=1 // pred_region
      %47 = dma.done [#allocation3], 256
    $region17: #{tpu_custom_call.1} parent=1 // pred_fallthru
      _
    %48 = vsyncpa [#allocation3], 1

</llo_original>
